<compile_context>
chip_gen: v5e
topology: v5e:2x2
jax: 0.10.0
libtpu: 0.0.40
codegen_flags: <defaults>
</compile_context>

<pallas_src>
import functools

import jax
import jax.numpy as jnp
from jax.experimental import pallas as pl
from jax.experimental.pallas import tpu as pltpu

LANE = 128  # lane width; all feature dims are padded to a multiple of this


def _round_up(x, m):
    return (x + m - 1) // m * m


def _cbow_mlp_kernel(x_ref, w_ref, b_ref, out_ref):
    """Whole problem resident in VMEM (single invocation, no grid).

    x_ref  : (M, F_in)  f32   raw stacked-context activations
    w_ref  : (L, P, P)  bf16  per-layer weights, zero-padded to (P, P)
    b_ref  : (L, P)     f32   per-layer biases, zero-padded
    out_ref: (M, P)     f32   log_softmax(dec, dim=0); cols >= out_dim are junk
    """
    f_in = x_ref.shape[1]
    num_layers = w_ref.shape[0]

    h = x_ref[...].astype(jnp.bfloat16)                 # (M, F_in) bf16 MXU feed
    z = None
    for l in range(num_layers):                         # static unroll
        w = w_ref[l]                                    # (P, P) bf16
        if l == 0 and f_in < w.shape[0]:
            w = w[:f_in, :]                             # only real input rows
        b = b_ref[pl.ds(l, 1), :]                       # (1, P) f32
        z = jnp.dot(h, w, preferred_element_type=jnp.float32) + b  # MXU, f32 acc
        z = jnp.maximum(z, 0.0)                         # ReLU after EVERY Linear
        # nn.Dropout: identity at inference.
        h = z.astype(jnp.bfloat16)                      # bf16 feed for next layer

    dec = z                                             # f32 logits (M, P)

    # F.log_softmax(dec, dim=0): per-column over all (real) rows; output stays
    # finite everywhere (padded columns just hold -log(M)).
    col_max = jnp.max(dec, axis=0, keepdims=True)       # (1, P)
    zc = dec - col_max
    lse = jnp.log(jnp.sum(jnp.exp(zc), axis=0, keepdims=True))
    out_ref[...] = (zc - lse).astype(out_ref.dtype)


def pack_cbow_params(weights, biases):
    """One-time packing of all Linear layers into two padded device buffers.

    Call this once at model init; do NOT call it per forward pass.
    Returns (w_packed (L,P,P) bf16, b_packed (L,P) f32).
    """
    dims = [weights[0].shape[0]] + [w.shape[1] for w in weights]
    P = _round_up(max(dims), LANE)
    L = len(weights)
    w_p = jnp.zeros((L, P, P), jnp.bfloat16)
    b_p = jnp.zeros((L, P), jnp.float32)
    for i, (w, b) in enumerate(zip(weights, biases)):
        w_p = w_p.at[i, : w.shape[0], : w.shape[1]].set(w.astype(jnp.bfloat16))
        b_p = b_p.at[i, : b.shape[0]].set(b.astype(jnp.float32))
    return w_p, b_p


@functools.partial(jax.jit, static_argnames=("out_dim", "return_padded"))
def cbow_forward(x_stacked, w_packed, b_packed, *, out_dim, return_padded=False):
    """x_stacked: (n_contexts, B, F_in) or (M, F_in); params from pack_cbow_params."""
    x2d = x_stacked.reshape(-1, x_stacked.shape[-1])    # free reshape, no concat op
    M, F_in = x2d.shape
    L, P, _ = w_packed.shape

    # Actual resident footprint (single-buffered: no grid, no pipelining).
    io_bytes = x2d.size * 4 + w_packed.size * 2 + b_packed.size * 4 + M * P * 4
    vmem_limit_bytes = 2 * io_bytes + (2 << 20)         # tight + headroom
    flops = 2 * M * P * P * L + 4 * M * P
    transcendentals = M * P + P

    vmem = pltpu.MemorySpace.VMEM
    out_p = pl.pallas_call(
        _cbow_mlp_kernel,
        out_shape=jax.ShapeDtypeStruct((M, P), jnp.float32),
        in_specs=[
            pl.BlockSpec(memory_space=vmem),
            pl.BlockSpec(memory_space=vmem),
            pl.BlockSpec(memory_space=vmem),
        ],
        out_specs=pl.BlockSpec(memory_space=vmem),
        compiler_params=pltpu.CompilerParams(vmem_limit_bytes=vmem_limit_bytes),
        cost_estimate=pl.CostEstimate(
            flops=flops, transcendentals=transcendentals, bytes_accessed=io_bytes
        ),
    )(x2d, w_packed, b_packed)

    if return_padded:
        return out_p                                    # (M, P), lane-dense, finite
    # Host-side slice to the module's (M, out_dim) contract; fuse into the
    # consumer (return_padded=True) if the extra copy matters.
    return out_p[:M, :out_dim]


def _cbow_reference(x_stacked, weights, biases):
    """Pure-JAX reference with the same bf16-operand / f32-accumulate matmuls."""
    x = x_stacked.reshape(-1, x_stacked.shape[-1]).astype(jnp.float32)
    h = x
    for w, b in zip(weights, biases):
        z = jnp.dot(h.astype(jnp.bfloat16), w.astype(jnp.bfloat16),
                    preferred_element_type=jnp.float32) + b.astype(jnp.float32)
        h = jnp.maximum(z, 0.0)                         # ReLU after every Linear
    return jax.nn.log_softmax(h, axis=0)


def _init_linear(key, fan_in, fan_out):
    """Xavier-uniform weight (as in the module) + PyTorch default bias init."""
    kw, kb = jax.random.split(key)
    bound_w = (6.0 / (fan_in + fan_out)) ** 0.5
    w = jax.random.uniform(kw, (fan_in, fan_out), jnp.float32, -bound_w, bound_w)
    bound_b = 1.0 / (fan_in ** 0.5)
    b = jax.random.uniform(kb, (fan_out,), jnp.float32, -bound_b, bound_b)
    return w, b


if __name__ == "__main__":
    # Module config (matches the constructor's dimension bookkeeping).
    input_dim = 16
    window_size = 3
    embedding_dim = 8
    enc_dim = [64]
    ls_dim = [32]
    dec_dim = [32]

    enc_dims = [input_dim * (window_size - 1)] + enc_dim        # [32, 64]
    ls_dims = [enc_dims[-1]] + ls_dim + [embedding_dim]         # [64, 32, 8]
    dec_dims = [embedding_dim] + dec_dim + [input_dim]          # [8, 32, 16]
    layer_dims = enc_dims + ls_dims[1:] + dec_dims[1:]          # [32,64,32,8,32,16]

    key = jax.random.PRNGKey(0)
    weights, biases = [], []
    for i in range(len(layer_dims) - 1):
        key, sub = jax.random.split(key)
        w, b = _init_linear(sub, layer_dims[i], layer_dims[i + 1])
        weights.append(w)
        biases.append(b)

    # One-time packing at init (hoisted out of the per-call path).
    w_packed, b_packed = pack_cbow_params(weights, biases)
    w_packed, b_packed = jax.block_until_ready((w_packed, b_packed))

    # Contexts pre-stacked (no concat): M = 3 * 44 = 132 rows.
    n_contexts = 3
    batch = 44
    key, kx = jax.random.split(key)
    x_stacked = jax.random.normal(kx, (n_contexts, batch, enc_dims[0]), jnp.float32)

    out = jax.block_until_ready(
        cbow_forward(x_stacked, w_packed, b_packed, out_dim=input_dim)
    )

    assert out.shape == (n_contexts * batch, input_dim)
    assert out.dtype == jnp.float32
    assert bool(jnp.all(jnp.isfinite(out)))

    # log_softmax over dim=0: exp-probabilities of each column sum to 1.
    col_sums = jnp.sum(jnp.exp(out), axis=0)
    assert bool(jnp.all(jnp.abs(col_sums - 1.0) < 1e-3))

    # Compare against a pure-JAX reference using the same bf16 matmul precision.
    ref = _cbow_reference(x_stacked, weights, biases)
    max_err = float(jnp.max(jnp.abs(out - ref)))
    assert max_err < 1e-2, f"mismatch vs reference: {max_err}"

    # Padded output path (for consumers that want to fuse the slice) is finite.
    out_pad = jax.block_until_ready(
        cbow_forward(x_stacked, w_packed, b_packed, out_dim=input_dim,
                     return_padded=True)
    )
    assert bool(jnp.all(jnp.isfinite(out_pad)))

    print("KERNEL_OK")
</pallas_src>

<mosaic_0001>
module attributes {stable_mosaic.version = 11 : i64} {
  func.func @_cbow_mlp_kernel(%arg0: memref<132x32xf32, #tpu.memory_space<vmem>>, %arg1: memref<5x128x128xbf16, #tpu.memory_space<vmem>>, %arg2: memref<5x128xf32, #tpu.memory_space<vmem>>, %arg3: memref<132x128xf32, #tpu.memory_space<vmem>>) attributes {dimension_semantics = [], scalar_prefetch = 0 : i64, scratch_operands = 0 : i64, tpu.core_type = #tpu.core_type<tc>} {
    %c0 = arith.constant 0 : index
    %c0_0 = arith.constant 0 : index
    %0 = vector.load %arg0[%c0, %c0_0] : memref<132x32xf32, #tpu.memory_space<vmem>>, vector<132x32xf32>
    %1 = arith.truncf %0 : vector<132x32xf32> to vector<132x32xbf16>
    %c0_1 = arith.constant 0 : index
    %c0_2 = arith.constant 0 : index
    %c0_3 = arith.constant 0 : index
    %2 = vector.load %arg1[%c0_1, %c0_2, %c0_3] : memref<5x128x128xbf16, #tpu.memory_space<vmem>>, vector<1x128x128xbf16>
    %3 = vector.shape_cast %2 : vector<1x128x128xbf16> to vector<128x128xbf16>
    %4 = vector.extract_strided_slice %3 {offsets = [0, 0], sizes = [32, 128], strides = [1, 1]} : vector<128x128xbf16> to vector<32x128xbf16>
    %c0_4 = arith.constant 0 : index
    %c0_5 = arith.constant 0 : index
    %5 = vector.load %arg2[%c0_4, %c0_5] : memref<5x128xf32, #tpu.memory_space<vmem>>, vector<1x128xf32>
    %cst = arith.constant dense<0.000000e+00> : vector<132x128xf32>
    %6 = tpu.matmul %1, %4, %cst {dimension_numbers = #tpu.dot_dimension_numbers<[1], [0], [0], [1], [0, 0, 1, 1], [], []>} : vector<132x32xbf16>, vector<32x128xbf16>, vector<132x128xf32> -> vector<132x128xf32>
    %7 = vector.broadcast %5 : vector<1x128xf32> to vector<132x128xf32>
    %8 = arith.addf %6, %7 : vector<132x128xf32>
    %cst_6 = arith.constant 0.000000e+00 : f32
    %9 = vector.broadcast %cst_6 : f32 to vector<132x128xf32>
    %10 = arith.maximumf %8, %9 : vector<132x128xf32>
    %11 = arith.truncf %10 : vector<132x128xf32> to vector<132x128xbf16>
    %c1 = arith.constant 1 : index
    %c0_7 = arith.constant 0 : index
    %c0_8 = arith.constant 0 : index
    %12 = vector.load %arg1[%c1, %c0_7, %c0_8] : memref<5x128x128xbf16, #tpu.memory_space<vmem>>, vector<1x128x128xbf16>
    %13 = vector.shape_cast %12 : vector<1x128x128xbf16> to vector<128x128xbf16>
    %c1_9 = arith.constant 1 : index
    %c0_10 = arith.constant 0 : index
    %14 = vector.load %arg2[%c1_9, %c0_10] : memref<5x128xf32, #tpu.memory_space<vmem>>, vector<1x128xf32>
    %cst_11 = arith.constant dense<0.000000e+00> : vector<132x128xf32>
    %15 = tpu.matmul %11, %13, %cst_11 {dimension_numbers = #tpu.dot_dimension_numbers<[1], [0], [0], [1], [0, 0, 1, 1], [], []>} : vector<132x128xbf16>, vector<128x128xbf16>, vector<132x128xf32> -> vector<132x128xf32>
    %16 = vector.broadcast %14 : vector<1x128xf32> to vector<132x128xf32>
    %17 = arith.addf %15, %16 : vector<132x128xf32>
    %cst_12 = arith.constant 0.000000e+00 : f32
    %18 = vector.broadcast %cst_12 : f32 to vector<132x128xf32>
    %19 = arith.maximumf %17, %18 : vector<132x128xf32>
    %20 = arith.truncf %19 : vector<132x128xf32> to vector<132x128xbf16>
    %c2 = arith.constant 2 : index
    %c0_13 = arith.constant 0 : index
    %c0_14 = arith.constant 0 : index
    %21 = vector.load %arg1[%c2, %c0_13, %c0_14] : memref<5x128x128xbf16, #tpu.memory_space<vmem>>, vector<1x128x128xbf16>
    %22 = vector.shape_cast %21 : vector<1x128x128xbf16> to vector<128x128xbf16>
    %c2_15 = arith.constant 2 : index
    %c0_16 = arith.constant 0 : index
    %23 = vector.load %arg2[%c2_15, %c0_16] : memref<5x128xf32, #tpu.memory_space<vmem>>, vector<1x128xf32>
    %cst_17 = arith.constant dense<0.000000e+00> : vector<132x128xf32>
    %24 = tpu.matmul %20, %22, %cst_17 {dimension_numbers = #tpu.dot_dimension_numbers<[1], [0], [0], [1], [0, 0, 1, 1], [], []>} : vector<132x128xbf16>, vector<128x128xbf16>, vector<132x128xf32> -> vector<132x128xf32>
    %25 = vector.broadcast %23 : vector<1x128xf32> to vector<132x128xf32>
    %26 = arith.addf %24, %25 : vector<132x128xf32>
    %cst_18 = arith.constant 0.000000e+00 : f32
    %27 = vector.broadcast %cst_18 : f32 to vector<132x128xf32>
    %28 = arith.maximumf %26, %27 : vector<132x128xf32>
    %29 = arith.truncf %28 : vector<132x128xf32> to vector<132x128xbf16>
    %c3 = arith.constant 3 : index
    %c0_19 = arith.constant 0 : index
    %c0_20 = arith.constant 0 : index
    %30 = vector.load %arg1[%c3, %c0_19, %c0_20] : memref<5x128x128xbf16, #tpu.memory_space<vmem>>, vector<1x128x128xbf16>
    %31 = vector.shape_cast %30 : vector<1x128x128xbf16> to vector<128x128xbf16>
    %c3_21 = arith.constant 3 : index
    %c0_22 = arith.constant 0 : index
    %32 = vector.load %arg2[%c3_21, %c0_22] : memref<5x128xf32, #tpu.memory_space<vmem>>, vector<1x128xf32>
    %cst_23 = arith.constant dense<0.000000e+00> : vector<132x128xf32>
    %33 = tpu.matmul %29, %31, %cst_23 {dimension_numbers = #tpu.dot_dimension_numbers<[1], [0], [0], [1], [0, 0, 1, 1], [], []>} : vector<132x128xbf16>, vector<128x128xbf16>, vector<132x128xf32> -> vector<132x128xf32>
    %34 = vector.broadcast %32 : vector<1x128xf32> to vector<132x128xf32>
    %35 = arith.addf %33, %34 : vector<132x128xf32>
    %cst_24 = arith.constant 0.000000e+00 : f32
    %36 = vector.broadcast %cst_24 : f32 to vector<132x128xf32>
    %37 = arith.maximumf %35, %36 : vector<132x128xf32>
    %38 = arith.truncf %37 : vector<132x128xf32> to vector<132x128xbf16>
    %c4 = arith.constant 4 : index
    %c0_25 = arith.constant 0 : index
    %c0_26 = arith.constant 0 : index
    %39 = vector.load %arg1[%c4, %c0_25, %c0_26] : memref<5x128x128xbf16, #tpu.memory_space<vmem>>, vector<1x128x128xbf16>
    %40 = vector.shape_cast %39 : vector<1x128x128xbf16> to vector<128x128xbf16>
    %c4_27 = arith.constant 4 : index
    %c0_28 = arith.constant 0 : index
    %41 = vector.load %arg2[%c4_27, %c0_28] : memref<5x128xf32, #tpu.memory_space<vmem>>, vector<1x128xf32>
    %cst_29 = arith.constant dense<0.000000e+00> : vector<132x128xf32>
    %42 = tpu.matmul %38, %40, %cst_29 {dimension_numbers = #tpu.dot_dimension_numbers<[1], [0], [0], [1], [0, 0, 1, 1], [], []>} : vector<132x128xbf16>, vector<128x128xbf16>, vector<132x128xf32> -> vector<132x128xf32>
    %43 = vector.broadcast %41 : vector<1x128xf32> to vector<132x128xf32>
    %44 = arith.addf %42, %43 : vector<132x128xf32>
    %cst_30 = arith.constant 0.000000e+00 : f32
    %45 = vector.broadcast %cst_30 : f32 to vector<132x128xf32>
    %46 = arith.maximumf %44, %45 : vector<132x128xf32>
    %cst_31 = arith.constant dense<0xFF800000> : vector<128xf32>
    %47 = vector.multi_reduction <maximumf>, %46, %cst_31 [0] : vector<132x128xf32> to vector<128xf32>
    %48 = vector.shape_cast %47 : vector<128xf32> to vector<1x128xf32>
    %49 = vector.broadcast %48 : vector<1x128xf32> to vector<132x128xf32>
    %50 = arith.subf %46, %49 : vector<132x128xf32>
    %51 = math.exp %50 : vector<132x128xf32>
    %cst_32 = arith.constant dense<0.000000e+00> : vector<128xf32>
    %52 = vector.multi_reduction <add>, %51, %cst_32 [0] : vector<132x128xf32> to vector<128xf32>
    %53 = vector.shape_cast %52 : vector<128xf32> to vector<1x128xf32>
    %54 = math.log %53 : vector<1x128xf32>
    %55 = vector.broadcast %54 : vector<1x128xf32> to vector<132x128xf32>
    %56 = arith.subf %50, %55 : vector<132x128xf32>
    %c0_33 = arith.constant 0 : index
    %c0_34 = arith.constant 0 : index
    %57 = vector.load %arg3[%c0_33, %c0_34] : memref<132x128xf32, #tpu.memory_space<vmem>>, vector<132x128xf32>
    tpu.vector_store %arg3[%c0_33, %c0_34], %56 {strides = array<i32>} : memref<132x128xf32, #tpu.memory_space<vmem>>, vector<132x128xf32>,
    return
  }
}

</mosaic_0001>

<llo_original>
// kernel: cbow_forward.1
$region0: #{cbow_forward.1}
  #allocation0 [shape = 'u32[]', space=smem, size = 0x4, offset = 0x4, fixed_abs, tag = 'smem constant byte address 0x4 - core index']
  #allocation1 [shape = 'u32[72,128]{1,0:T(1,128)}', space=vmem, size = 0x9000, scoped, tag = 'internal scratch']
  %s0 = inlined_call_operand.vmem [shape: f32[132,32], index: 0, kind: input, shape index: {}]
  %s1 = inlined_call_operand.vmem [shape: bf16[5,128,128], index: 1, kind: input, shape index: {}]
  %s2 = inlined_call_operand.vmem [shape: f32[5,128], index: 2, kind: input, shape index: {}]
  %s3 = inlined_call_operand.vmem [shape: f32[132,128], index: 3, kind: output, shape index: {}]
  %s4 = sld [smem:[#allocation0]]
  $region22: #{cbow_forward.1} parent=0
    _
  %s6 = ssub.s32 1, %s4
  %s7 = scalar_select 0, %s6, %s4
  // Predicated region
  $region2: #{cbow_forward.1} parent=0 // pred_check
    _
  $region3: #{cbow_forward.1} parent=0 // pred_check_branch
    %9 = sbr.rel (0) target = $region5
  $region4: #{cbow_forward.1} parent=0 // pred_region
    _
  $region5: #{cbow_forward.1} parent=0 // pred_fallthru
    _
  // Predicated region
  $region6: #{cbow_forward.1} parent=0 // pred_check
    _
  $region7: #{cbow_forward.1} parent=0 // pred_check_branch
    %11 = sbr.rel (0) target = $region9
  $region8: #{cbow_forward.1} parent=0 // pred_region
    _
  $region9: #{cbow_forward.1} parent=0 // pred_fallthru
    _
  // Predicated region
  $region10: #{cbow_forward.1} parent=0 // pred_check
    _
  $region11: #{cbow_forward.1} parent=0 // pred_check_branch
    %13 = sbr.rel (0) target = $region13
  $region12: #{cbow_forward.1} parent=0 // pred_region
    _
  $region13: #{cbow_forward.1} parent=0 // pred_fallthru
    _
  %v15 = vld [vmem:[%s0] sm:$0xff]
  %v16 = vld [vmem:[%s0 + $0x8] sm:$0xff]
  %v17 = vld [vmem:[%s0 + $0x10] sm:$0xff]
  %v18 = vld [vmem:[%s0 + $0x18] sm:$0xff]
  %v19 = vld [vmem:[%s0 + $0x20] sm:$0xff]
  %v20 = vld [vmem:[%s0 + $0x28] sm:$0xff]
  %v21 = vld [vmem:[%s0 + $0x30] sm:$0xff]
  %v22 = vld [vmem:[%s0 + $0x38] sm:$0xff]
  %v23 = vld [vmem:[%s0 + $0x40] sm:$0xff]
  %v24 = vld [vmem:[%s0 + $0x48] sm:$0xff]
  %v25 = vld [vmem:[%s0 + $0x50] sm:$0xff]
  %v26 = vld [vmem:[%s0 + $0x58] sm:$0xff]
  %v27 = vld [vmem:[%s0 + $0x60] sm:$0xff]
  %v28 = vld [vmem:[%s0 + $0x68] sm:$0xff]
  %v29 = vld [vmem:[%s0 + $0x70] sm:$0xff]
  %v30 = vld [vmem:[%s0 + $0x78] sm:$0xff]
  %v31 = vld [vmem:[%s0 + $0x80] sm:$0xf]
  %v32 = vpack.c.bf16 %v16, %v15
  %v33 = vpack.c.bf16 %v18, %v17
  %v34 = vpack.c.bf16 %v20, %v19
  %v35 = vpack.c.bf16 %v22, %v21
  %v36 = vpack.c.bf16 %v24, %v23
  %v37 = vpack.c.bf16 %v26, %v25
  %v38 = vpack.c.bf16 %v28, %v27
  %v39 = vpack.c.bf16 %v30, %v29
  %v40 = vpack.c.bf16 %v31, %v31
  %v41 = vld [vmem:[%s1] sm:$0xf]
  %v42 = vld [vmem:[%s1 + $0x4] sm:$0xf]
  %v43 = vld [vmem:[%s1 + $0x8] sm:$0xf]
  %v44 = vld [vmem:[%s1 + $0xc] sm:$0xf]
  %v45 = vld [vmem:[%s2] sm:$0x1]
  %v46 = vperm.slane %v45, 0
  %v51 = vunpack.c.l.b16 %v41
  %v52 = vunpack.c.l.b16 %v42
  %v53 = vunpack.c.l.b16 %v43
  %v54 = vunpack.c.l.b16 %v44
  %v55 = vpack.c.b16 %v52, %v51
  %v56 = vpack.c.b16 %v54, %v53
  %vm59 = vcmask 261120
  %v61 = vsel %vm59, %v32, 0
  %v64 = vsel %vm59, %v33, 0
  %v67 = vsel %vm59, %v34, 0
  %v70 = vsel %vm59, %v35, 0
  %v73 = vsel %vm59, %v36, 0
  %v76 = vsel %vm59, %v37, 0
  %v79 = vsel %vm59, %v38, 0
  %v82 = vsel %vm59, %v39, 0
  %v85 = vsel %vm59, %v40, 0
  %87 = vmatpush.bf16.msra.mxu0 0
  %88 = vmatpush.bf16.msra.mxu0 0
  %89 = vmatpush.bf16.msra.mxu0 0
  %90 = vmatpush.bf16.msra.mxu0 0
  %91 = vmatpush.bf16.msra.mxu0 0
  %92 = vmatpush.bf16.msra.mxu0 0
  %93 = vmatpush.bf16.msra.mxu0 %v56
  %94 = vmatpush.bf16.msra.mxu0 %v55
  %95 = vmatmul.bf16.gmra.mxu0 %v61
  %v96 = vpop.f32.mrf.mxu0
  %v97 = vadd.f32 %v46, %v96
  %v98 = vpop.f32.mrf.mxu0
  %v99 = vadd.f32 %v46, %v98
  %100 = vmatmul.bf16.gmra.mxu0 %v64
  %v101 = vpop.f32.mrf.mxu0
  %v102 = vadd.f32 %v46, %v101
  %v103 = vpop.f32.mrf.mxu0
  %v104 = vadd.f32 %v46, %v103
  %105 = vmatmul.bf16.gmra.mxu0 %v67
  %v106 = vpop.f32.mrf.mxu0
  %v107 = vadd.f32 %v46, %v106
  %v108 = vpop.f32.mrf.mxu0
  %v109 = vadd.f32 %v46, %v108
  %110 = vmatmul.bf16.gmra.mxu0 %v70
  %v111 = vpop.f32.mrf.mxu0
  %v112 = vadd.f32 %v46, %v111
  %v113 = vpop.f32.mrf.mxu0
  %v114 = vadd.f32 %v46, %v113
  %115 = vmatmul.bf16.gmra.mxu0 %v73
  %v116 = vpop.f32.mrf.mxu0
  %v117 = vadd.f32 %v46, %v116
  %v118 = vpop.f32.mrf.mxu0
  %v119 = vadd.f32 %v46, %v118
  %120 = vmatmul.bf16.gmra.mxu0 %v76
  %v121 = vpop.f32.mrf.mxu0
  %v122 = vadd.f32 %v46, %v121
  %v123 = vpop.f32.mrf.mxu0
  %v124 = vadd.f32 %v46, %v123
  %125 = vmatmul.bf16.gmra.mxu0 %v79
  %v126 = vpop.f32.mrf.mxu0
  %v127 = vadd.f32 %v46, %v126
  %v128 = vpop.f32.mrf.mxu0
  %v129 = vadd.f32 %v46, %v128
  %130 = vmatmul.bf16.gmra.mxu0 %v82
  %v131 = vpop.f32.mrf.mxu0
  %v132 = vadd.f32 %v46, %v131
  %v133 = vpop.f32.mrf.mxu0
  %v134 = vadd.f32 %v46, %v133
  %135 = vmatmul.bf16.gmra.mxu0 %v85
  %v136 = vpop.f32.mrf.mxu0
  %v137 = vadd.f32 %v46, %v136
  %v138 = vpop.f32.mrf.mxu0
  %139 = vdwg.mxu0
  %v140 = vmax.f32 %v97, 0.0
  %v141 = vmax.f32 %v99, 0.0
  %v142 = vmax.f32 %v102, 0.0
  %v143 = vmax.f32 %v104, 0.0
  %v144 = vmax.f32 %v107, 0.0
  %v145 = vmax.f32 %v109, 0.0
  %v146 = vmax.f32 %v112, 0.0
  %v147 = vmax.f32 %v114, 0.0
  %v148 = vmax.f32 %v117, 0.0
  %v149 = vmax.f32 %v119, 0.0
  %v150 = vmax.f32 %v122, 0.0
  %v151 = vmax.f32 %v124, 0.0
  %v152 = vmax.f32 %v127, 0.0
  %v153 = vmax.f32 %v129, 0.0
  %v154 = vmax.f32 %v132, 0.0
  %v155 = vmax.f32 %v134, 0.0
  %v156 = vmax.f32 %v137, 0.0
  %v157 = vpack.c.bf16 %v141, %v140
  %v158 = vpack.c.bf16 %v143, %v142
  %v159 = vpack.c.bf16 %v145, %v144
  %v160 = vpack.c.bf16 %v147, %v146
  %v161 = vpack.c.bf16 %v149, %v148
  %v162 = vpack.c.bf16 %v151, %v150
  %v163 = vpack.c.bf16 %v153, %v152
  %v164 = vpack.c.bf16 %v155, %v154
  %v165 = vpack.c.bf16 %v156, %v156
  %s166 = scalar_lea.vmem %s1, 64
  %v167 = vld [vmem:[%s166] sm:$0xf]
  %v168 = vld [vmem:[%s166 + $0x4] sm:$0xf]
  %v169 = vld [vmem:[%s166 + $0x8] sm:$0xf]
  %v170 = vld [vmem:[%s166 + $0xc] sm:$0xf]
  %v171 = vld [vmem:[%s166 + $0x10] sm:$0xf]
  %v172 = vld [vmem:[%s166 + $0x14] sm:$0xf]
  %v173 = vld [vmem:[%s166 + $0x18] sm:$0xf]
  %v174 = vld [vmem:[%s166 + $0x1c] sm:$0xf]
  %v175 = vld [vmem:[%s166 + $0x20] sm:$0xf]
  %v176 = vld [vmem:[%s166 + $0x24] sm:$0xf]
  %v177 = vld [vmem:[%s166 + $0x28] sm:$0xf]
  %v178 = vld [vmem:[%s166 + $0x2c] sm:$0xf]
  %v179 = vld [vmem:[%s166 + $0x30] sm:$0xf]
  %v180 = vld [vmem:[%s166 + $0x34] sm:$0xf]
  %v181 = vld [vmem:[%s166 + $0x38] sm:$0xf]
  %v182 = vld [vmem:[%s166 + $0x3c] sm:$0xf]
  %v183 = vld [vmem:[%s2 + $0x1] sm:$0x1]
  %v184 = vperm.slane %v183, 0
  %v201 = vunpack.c.l.b16 %v167
  %v202 = vunpack.c.l.b16 %v168
  %v203 = vunpack.c.l.b16 %v169
  %v204 = vunpack.c.l.b16 %v170
  %v205 = vunpack.c.l.b16 %v171
  %v206 = vunpack.c.l.b16 %v172
  %v207 = vunpack.c.l.b16 %v173
  %v208 = vunpack.c.l.b16 %v174
  %v209 = vunpack.c.l.b16 %v175
  %v210 = vunpack.c.l.b16 %v176
  %v211 = vunpack.c.l.b16 %v177
  %v212 = vunpack.c.l.b16 %v178
  %v213 = vunpack.c.l.b16 %v179
  %v214 = vunpack.c.l.b16 %v180
  %v215 = vunpack.c.l.b16 %v181
  %v216 = vunpack.c.l.b16 %v182
  %v217 = vpack.c.b16 %v202, %v201
  %v218 = vpack.c.b16 %v204, %v203
  %v219 = vpack.c.b16 %v206, %v205
  %v220 = vpack.c.b16 %v208, %v207
  %v221 = vpack.c.b16 %v210, %v209
  %v222 = vpack.c.b16 %v212, %v211
  %v223 = vpack.c.b16 %v214, %v213
  %v224 = vpack.c.b16 %v216, %v215
  %233 = vmatpush.bf16.msra.mxu0 %v224
  %234 = vmatpush.bf16.msra.mxu0 %v223
  %235 = vmatpush.bf16.msra.mxu0 %v222
  %236 = vmatpush.bf16.msra.mxu0 %v221
  %237 = vmatpush.bf16.msra.mxu0 %v220
  %238 = vmatpush.bf16.msra.mxu0 %v219
  %239 = vmatpush.bf16.msra.mxu0 %v218
  %240 = vmatpush.bf16.msra.mxu0 %v217
  %241 = vmatmul.bf16.gmra.mxu0 %v157
  %v242 = vpop.f32.mrf.mxu0
  %v243 = vadd.f32 %v184, %v242
  %v244 = vpop.f32.mrf.mxu0
  %v245 = vadd.f32 %v184, %v244
  %246 = vmatmul.bf16.gmra.mxu0 %v158
  %v247 = vpop.f32.mrf.mxu0
  %v248 = vadd.f32 %v184, %v247
  %v249 = vpop.f32.mrf.mxu0
  %v250 = vadd.f32 %v184, %v249
  %251 = vmatmul.bf16.gmra.mxu0 %v159
  %v252 = vpop.f32.mrf.mxu0
  %v253 = vadd.f32 %v184, %v252
  %v254 = vpop.f32.mrf.mxu0
  %v255 = vadd.f32 %v184, %v254
  %256 = vmatmul.bf16.gmra.mxu0 %v160
  %v257 = vpop.f32.mrf.mxu0
  %v258 = vadd.f32 %v184, %v257
  %v259 = vpop.f32.mrf.mxu0
  %v260 = vadd.f32 %v184, %v259
  %261 = vmatmul.bf16.gmra.mxu0 %v161
  %v262 = vpop.f32.mrf.mxu0
  %v263 = vadd.f32 %v184, %v262
  %v264 = vpop.f32.mrf.mxu0
  %v265 = vadd.f32 %v184, %v264
  %266 = vmatmul.bf16.gmra.mxu0 %v162
  %v267 = vpop.f32.mrf.mxu0
  %v268 = vadd.f32 %v184, %v267
  %v269 = vpop.f32.mrf.mxu0
  %v270 = vadd.f32 %v184, %v269
  %271 = vmatmul.bf16.gmra.mxu0 %v163
  %v272 = vpop.f32.mrf.mxu0
  %v273 = vadd.f32 %v184, %v272
  %v274 = vpop.f32.mrf.mxu0
  %v275 = vadd.f32 %v184, %v274
  %276 = vmatmul.bf16.gmra.mxu0 %v164
  %v277 = vpop.f32.mrf.mxu0
  %v278 = vadd.f32 %v184, %v277
  %v279 = vpop.f32.mrf.mxu0
  %v280 = vadd.f32 %v184, %v279
  %281 = vmatmul.bf16.gmra.mxu0 %v165
  %v282 = vpop.f32.mrf.mxu0
  %v283 = vadd.f32 %v184, %v282
  %v284 = vpop.f32.mrf.mxu0
  %285 = vdwg.mxu0
  %v286 = vmax.f32 %v243, 0.0
  %v287 = vmax.f32 %v245, 0.0
  %v288 = vmax.f32 %v248, 0.0
  %v289 = vmax.f32 %v250, 0.0
  %v290 = vmax.f32 %v253, 0.0
  %v291 = vmax.f32 %v255, 0.0
  %v292 = vmax.f32 %v258, 0.0
  %v293 = vmax.f32 %v260, 0.0
  %v294 = vmax.f32 %v263, 0.0
  %v295 = vmax.f32 %v265, 0.0
  %v296 = vmax.f32 %v268, 0.0
  %v297 = vmax.f32 %v270, 0.0
  %v298 = vmax.f32 %v273, 0.0
  %v299 = vmax.f32 %v275, 0.0
  %v300 = vmax.f32 %v278, 0.0
  %v301 = vmax.f32 %v280, 0.0
  %v302 = vmax.f32 %v283, 0.0
  %v303 = vpack.c.bf16 %v287, %v286
  %v304 = vpack.c.bf16 %v289, %v288
  %v305 = vpack.c.bf16 %v291, %v290
  %v306 = vpack.c.bf16 %v293, %v292
  %v307 = vpack.c.bf16 %v295, %v294
  %v308 = vpack.c.bf16 %v297, %v296
  %v309 = vpack.c.bf16 %v299, %v298
  %v310 = vpack.c.bf16 %v301, %v300
  %v311 = vpack.c.bf16 %v302, %v302
  %s312 = scalar_lea.vmem %s1, 128
  %v313 = vld [vmem:[%s312] sm:$0xf]
  %v314 = vld [vmem:[%s312 + $0x4] sm:$0xf]
  %v315 = vld [vmem:[%s312 + $0x8] sm:$0xf]
  %v316 = vld [vmem:[%s312 + $0xc] sm:$0xf]
  %v317 = vld [vmem:[%s312 + $0x10] sm:$0xf]
  %v318 = vld [vmem:[%s312 + $0x14] sm:$0xf]
  %v319 = vld [vmem:[%s312 + $0x18] sm:$0xf]
  %v320 = vld [vmem:[%s312 + $0x1c] sm:$0xf]
  %v321 = vld [vmem:[%s312 + $0x20] sm:$0xf]
  %v322 = vld [vmem:[%s312 + $0x24] sm:$0xf]
  %v323 = vld [vmem:[%s312 + $0x28] sm:$0xf]
  %v324 = vld [vmem:[%s312 + $0x2c] sm:$0xf]
  %v325 = vld [vmem:[%s312 + $0x30] sm:$0xf]
  %v326 = vld [vmem:[%s312 + $0x34] sm:$0xf]
  %v327 = vld [vmem:[%s312 + $0x38] sm:$0xf]
  %v328 = vld [vmem:[%s312 + $0x3c] sm:$0xf]
  %v329 = vld [vmem:[%s2 + $0x2] sm:$0x1]
  %v330 = vperm.slane %v329, 0
  %v347 = vunpack.c.l.b16 %v313
  %v348 = vunpack.c.l.b16 %v314
  %v349 = vunpack.c.l.b16 %v315
  %v350 = vunpack.c.l.b16 %v316
  %v351 = vunpack.c.l.b16 %v317
  %v352 = vunpack.c.l.b16 %v318
  %v353 = vunpack.c.l.b16 %v319
  %v354 = vunpack.c.l.b16 %v320
  %v355 = vunpack.c.l.b16 %v321
  %v356 = vunpack.c.l.b16 %v322
  %v357 = vunpack.c.l.b16 %v323
  %v358 = vunpack.c.l.b16 %v324
  %v359 = vunpack.c.l.b16 %v325
  %v360 = vunpack.c.l.b16 %v326
  %v361 = vunpack.c.l.b16 %v327
  %v362 = vunpack.c.l.b16 %v328
  %v363 = vpack.c.b16 %v348, %v347
  %v364 = vpack.c.b16 %v350, %v349
  %v365 = vpack.c.b16 %v352, %v351
  %v366 = vpack.c.b16 %v354, %v353
  %v367 = vpack.c.b16 %v356, %v355
  %v368 = vpack.c.b16 %v358, %v357
  %v369 = vpack.c.b16 %v360, %v359
  %v370 = vpack.c.b16 %v362, %v361
  %379 = vmatpush.bf16.msra.mxu0 %v370
  %380 = vmatpush.bf16.msra.mxu0 %v369
  %381 = vmatpush.bf16.msra.mxu0 %v368
  %382 = vmatpush.bf16.msra.mxu0 %v367
  %383 = vmatpush.bf16.msra.mxu0 %v366
  %384 = vmatpush.bf16.msra.mxu0 %v365
  %385 = vmatpush.bf16.msra.mxu0 %v364
  %386 = vmatpush.bf16.msra.mxu0 %v363
  %387 = vmatmul.bf16.gmra.mxu0 %v303
  %v388 = vpop.f32.mrf.mxu0
  %v389 = vadd.f32 %v330, %v388
  %v390 = vpop.f32.mrf.mxu0
  %v391 = vadd.f32 %v330, %v390
  %392 = vmatmul.bf16.gmra.mxu0 %v304
  %v393 = vpop.f32.mrf.mxu0
  %v394 = vadd.f32 %v330, %v393
  %v395 = vpop.f32.mrf.mxu0
  %v396 = vadd.f32 %v330, %v395
  %397 = vmatmul.bf16.gmra.mxu0 %v305
  %v398 = vpop.f32.mrf.mxu0
  %v399 = vadd.f32 %v330, %v398
  %v400 = vpop.f32.mrf.mxu0
  %v401 = vadd.f32 %v330, %v400
  %402 = vmatmul.bf16.gmra.mxu0 %v306
  %v403 = vpop.f32.mrf.mxu0
  %v404 = vadd.f32 %v330, %v403
  %v405 = vpop.f32.mrf.mxu0
  %v406 = vadd.f32 %v330, %v405
  %407 = vmatmul.bf16.gmra.mxu0 %v307
  %v408 = vpop.f32.mrf.mxu0
  %v409 = vadd.f32 %v330, %v408
  %v410 = vpop.f32.mrf.mxu0
  %v411 = vadd.f32 %v330, %v410
  %412 = vmatmul.bf16.gmra.mxu0 %v308
  %v413 = vpop.f32.mrf.mxu0
  %v414 = vadd.f32 %v330, %v413
  %v415 = vpop.f32.mrf.mxu0
  %v416 = vadd.f32 %v330, %v415
  %417 = vmatmul.bf16.gmra.mxu0 %v309
  %v418 = vpop.f32.mrf.mxu0
  %v419 = vadd.f32 %v330, %v418
  %v420 = vpop.f32.mrf.mxu0
  %v421 = vadd.f32 %v330, %v420
  %422 = vmatmul.bf16.gmra.mxu0 %v310
  %v423 = vpop.f32.mrf.mxu0
  %v424 = vadd.f32 %v330, %v423
  %v425 = vpop.f32.mrf.mxu0
  %v426 = vadd.f32 %v330, %v425
  %427 = vmatmul.bf16.gmra.mxu0 %v311
  %v428 = vpop.f32.mrf.mxu0
  %v429 = vadd.f32 %v330, %v428
  %v430 = vpop.f32.mrf.mxu0
  %431 = vdwg.mxu0
  %v432 = vmax.f32 %v389, 0.0
  %v433 = vmax.f32 %v391, 0.0
  %v434 = vmax.f32 %v394, 0.0
  %v435 = vmax.f32 %v396, 0.0
  %v436 = vmax.f32 %v399, 0.0
  %v437 = vmax.f32 %v401, 0.0
  %v438 = vmax.f32 %v404, 0.0
  %v439 = vmax.f32 %v406, 0.0
  %v440 = vmax.f32 %v409, 0.0
  %v441 = vmax.f32 %v411, 0.0
  %v442 = vmax.f32 %v414, 0.0
  %v443 = vmax.f32 %v416, 0.0
  %v444 = vmax.f32 %v419, 0.0
  %v445 = vmax.f32 %v421, 0.0
  %v446 = vmax.f32 %v424, 0.0
  %v447 = vmax.f32 %v426, 0.0
  %v448 = vmax.f32 %v429, 0.0
  %v449 = vpack.c.bf16 %v433, %v432
  %v450 = vpack.c.bf16 %v435, %v434
  %v451 = vpack.c.bf16 %v437, %v436
  %v452 = vpack.c.bf16 %v439, %v438
  %v453 = vpack.c.bf16 %v441, %v440
  %v454 = vpack.c.bf16 %v443, %v442
  %v455 = vpack.c.bf16 %v445, %v444
  %v456 = vpack.c.bf16 %v447, %v446
  %v457 = vpack.c.bf16 %v448, %v448
  %s458 = scalar_lea.vmem %s1, 192
  %v459 = vld [vmem:[%s458] sm:$0xf]
  %v460 = vld [vmem:[%s458 + $0x4] sm:$0xf]
  %v461 = vld [vmem:[%s458 + $0x8] sm:$0xf]
  %v462 = vld [vmem:[%s458 + $0xc] sm:$0xf]
  %v463 = vld [vmem:[%s458 + $0x10] sm:$0xf]
  %v464 = vld [vmem:[%s458 + $0x14] sm:$0xf]
  %v465 = vld [vmem:[%s458 + $0x18] sm:$0xf]
  %v466 = vld [vmem:[%s458 + $0x1c] sm:$0xf]
  %v467 = vld [vmem:[%s458 + $0x20] sm:$0xf]
  %v468 = vld [vmem:[%s458 + $0x24] sm:$0xf]
  %v469 = vld [vmem:[%s458 + $0x28] sm:$0xf]
  %v470 = vld [vmem:[%s458 + $0x2c] sm:$0xf]
  %v471 = vld [vmem:[%s458 + $0x30] sm:$0xf]
  %v472 = vld [vmem:[%s458 + $0x34] sm:$0xf]
  %v473 = vld [vmem:[%s458 + $0x38] sm:$0xf]
  %v474 = vld [vmem:[%s458 + $0x3c] sm:$0xf]
  %v475 = vld [vmem:[%s2 + $0x3] sm:$0x1]
  %v476 = vperm.slane %v475, 0
  %v493 = vunpack.c.l.b16 %v459
  %v494 = vunpack.c.l.b16 %v460
  %v495 = vunpack.c.l.b16 %v461
  %v496 = vunpack.c.l.b16 %v462
  %v497 = vunpack.c.l.b16 %v463
  %v498 = vunpack.c.l.b16 %v464
  %v499 = vunpack.c.l.b16 %v465
  %v500 = vunpack.c.l.b16 %v466
  %v501 = vunpack.c.l.b16 %v467
  %v502 = vunpack.c.l.b16 %v468
  %v503 = vunpack.c.l.b16 %v469
  %v504 = vunpack.c.l.b16 %v470
  %v505 = vunpack.c.l.b16 %v471
  %v506 = vunpack.c.l.b16 %v472
  %v507 = vunpack.c.l.b16 %v473
  %v508 = vunpack.c.l.b16 %v474
  %v509 = vpack.c.b16 %v494, %v493
  %v510 = vpack.c.b16 %v496, %v495
  %v511 = vpack.c.b16 %v498, %v497
  %v512 = vpack.c.b16 %v500, %v499
  %v513 = vpack.c.b16 %v502, %v501
  %v514 = vpack.c.b16 %v504, %v503
  %v515 = vpack.c.b16 %v506, %v505
  %v516 = vpack.c.b16 %v508, %v507
  %525 = vmatpush.bf16.msra.mxu0 %v516
  %526 = vmatpush.bf16.msra.mxu0 %v515
  %527 = vmatpush.bf16.msra.mxu0 %v514
  %528 = vmatpush.bf16.msra.mxu0 %v513
  %529 = vmatpush.bf16.msra.mxu0 %v512
  %530 = vmatpush.bf16.msra.mxu0 %v511
  %531 = vmatpush.bf16.msra.mxu0 %v510
  %532 = vmatpush.bf16.msra.mxu0 %v509
  %533 = vmatmul.bf16.gmra.mxu0 %v449
  %v534 = vpop.f32.mrf.mxu0
  %v535 = vadd.f32 %v476, %v534
  %v536 = vpop.f32.mrf.mxu0
  %v537 = vadd.f32 %v476, %v536
  %538 = vmatmul.bf16.gmra.mxu0 %v450
  %v539 = vpop.f32.mrf.mxu0
  %v540 = vadd.f32 %v476, %v539
  %v541 = vpop.f32.mrf.mxu0
  %v542 = vadd.f32 %v476, %v541
  %543 = vmatmul.bf16.gmra.mxu0 %v451
  %v544 = vpop.f32.mrf.mxu0
  %v545 = vadd.f32 %v476, %v544
  %v546 = vpop.f32.mrf.mxu0
  %v547 = vadd.f32 %v476, %v546
  %548 = vmatmul.bf16.gmra.mxu0 %v452
  %v549 = vpop.f32.mrf.mxu0
  %v550 = vadd.f32 %v476, %v549
  %v551 = vpop.f32.mrf.mxu0
  %v552 = vadd.f32 %v476, %v551
  %553 = vmatmul.bf16.gmra.mxu0 %v453
  %v554 = vpop.f32.mrf.mxu0
  %v555 = vadd.f32 %v476, %v554
  %v556 = vpop.f32.mrf.mxu0
  %v557 = vadd.f32 %v476, %v556
  %558 = vmatmul.bf16.gmra.mxu0 %v454
  %v559 = vpop.f32.mrf.mxu0
  %v560 = vadd.f32 %v476, %v559
  %v561 = vpop.f32.mrf.mxu0
  %v562 = vadd.f32 %v476, %v561
  %563 = vmatmul.bf16.gmra.mxu0 %v455
  %v564 = vpop.f32.mrf.mxu0
  %v565 = vadd.f32 %v476, %v564
  %v566 = vpop.f32.mrf.mxu0
  %v567 = vadd.f32 %v476, %v566
  %568 = vmatmul.bf16.gmra.mxu0 %v456
  %v569 = vpop.f32.mrf.mxu0
  %v570 = vadd.f32 %v476, %v569
  %v571 = vpop.f32.mrf.mxu0
  %v572 = vadd.f32 %v476, %v571
  %573 = vmatmul.bf16.gmra.mxu0 %v457
  %v574 = vpop.f32.mrf.mxu0
  %v575 = vadd.f32 %v476, %v574
  %v576 = vpop.f32.mrf.mxu0
  %577 = vdwg.mxu0
  %v578 = vmax.f32 %v535, 0.0
  %v579 = vmax.f32 %v537, 0.0
  %v580 = vmax.f32 %v540, 0.0
  %v581 = vmax.f32 %v542, 0.0
  %v582 = vmax.f32 %v545, 0.0
  %v583 = vmax.f32 %v547, 0.0
  %v584 = vmax.f32 %v550, 0.0
  %v585 = vmax.f32 %v552, 0.0
  %v586 = vmax.f32 %v555, 0.0
  %v587 = vmax.f32 %v557, 0.0
  %v588 = vmax.f32 %v560, 0.0
  %v589 = vmax.f32 %v562, 0.0
  %v590 = vmax.f32 %v565, 0.0
  %v591 = vmax.f32 %v567, 0.0
  %v592 = vmax.f32 %v570, 0.0
  %v593 = vmax.f32 %v572, 0.0
  %v594 = vmax.f32 %v575, 0.0
  %v595 = vpack.c.bf16 %v579, %v578
  %v596 = vpack.c.bf16 %v581, %v580
  %v597 = vpack.c.bf16 %v583, %v582
  %v598 = vpack.c.bf16 %v585, %v584
  %v599 = vpack.c.bf16 %v587, %v586
  %v600 = vpack.c.bf16 %v589, %v588
  %v601 = vpack.c.bf16 %v591, %v590
  %v602 = vpack.c.bf16 %v593, %v592
  %v603 = vpack.c.bf16 %v594, %v594
  %s604 = scalar_lea.vmem %s1, 256
  %v605 = vld [vmem:[%s604] sm:$0xf]
  %v606 = vld [vmem:[%s604 + $0x4] sm:$0xf]
  %v607 = vld [vmem:[%s604 + $0x8] sm:$0xf]
  %v608 = vld [vmem:[%s604 + $0xc] sm:$0xf]
  %v609 = vld [vmem:[%s604 + $0x10] sm:$0xf]
  %v610 = vld [vmem:[%s604 + $0x14] sm:$0xf]
  %v611 = vld [vmem:[%s604 + $0x18] sm:$0xf]
  %v612 = vld [vmem:[%s604 + $0x1c] sm:$0xf]
  %v613 = vld [vmem:[%s604 + $0x20] sm:$0xf]
  %v614 = vld [vmem:[%s604 + $0x24] sm:$0xf]
  %v615 = vld [vmem:[%s604 + $0x28] sm:$0xf]
  %v616 = vld [vmem:[%s604 + $0x2c] sm:$0xf]
  %v617 = vld [vmem:[%s604 + $0x30] sm:$0xf]
  %v618 = vld [vmem:[%s604 + $0x34] sm:$0xf]
  %v619 = vld [vmem:[%s604 + $0x38] sm:$0xf]
  %v620 = vld [vmem:[%s604 + $0x3c] sm:$0xf]
  %v621 = vld [vmem:[%s2 + $0x4] sm:$0x1]
  %v622 = vperm.slane %v621, 0
  %v639 = vunpack.c.l.b16 %v605
  %v640 = vunpack.c.l.b16 %v606
  %v641 = vunpack.c.l.b16 %v607
  %v642 = vunpack.c.l.b16 %v608
  %v643 = vunpack.c.l.b16 %v609
  %v644 = vunpack.c.l.b16 %v610
  %v645 = vunpack.c.l.b16 %v611
  %v646 = vunpack.c.l.b16 %v612
  %v647 = vunpack.c.l.b16 %v613
  %v648 = vunpack.c.l.b16 %v614
  %v649 = vunpack.c.l.b16 %v615
  %v650 = vunpack.c.l.b16 %v616
  %v651 = vunpack.c.l.b16 %v617
  %v652 = vunpack.c.l.b16 %v618
  %v653 = vunpack.c.l.b16 %v619
  %v654 = vunpack.c.l.b16 %v620
  %v655 = vpack.c.b16 %v640, %v639
  %v656 = vpack.c.b16 %v642, %v641
  %v657 = vpack.c.b16 %v644, %v643
  %v658 = vpack.c.b16 %v646, %v645
  %v659 = vpack.c.b16 %v648, %v647
  %v660 = vpack.c.b16 %v650, %v649
  %v661 = vpack.c.b16 %v652, %v651
  %v662 = vpack.c.b16 %v654, %v653
  %671 = vmatpush.bf16.msra.mxu0 %v662
  %672 = vmatpush.bf16.msra.mxu0 %v661
  %673 = vmatpush.bf16.msra.mxu0 %v660
  %674 = vmatpush.bf16.msra.mxu0 %v659
  %675 = vmatpush.bf16.msra.mxu0 %v658
  %676 = vmatpush.bf16.msra.mxu0 %v657
  %677 = vmatpush.bf16.msra.mxu0 %v656
  %678 = vmatpush.bf16.msra.mxu0 %v655
  %679 = vmatmul.bf16.gmra.mxu0 %v595
  %v680 = vpop.f32.mrf.mxu0
  %v681 = vadd.f32 %v622, %v680
  %v682 = vpop.f32.mrf.mxu0
  %v683 = vadd.f32 %v622, %v682
  %684 = vmatmul.bf16.gmra.mxu0 %v596
  %v685 = vpop.f32.mrf.mxu0
  %v686 = vadd.f32 %v622, %v685
  %v687 = vpop.f32.mrf.mxu0
  %v688 = vadd.f32 %v622, %v687
  %689 = vmatmul.bf16.gmra.mxu0 %v597
  %v690 = vpop.f32.mrf.mxu0
  %v691 = vadd.f32 %v622, %v690
  %v692 = vpop.f32.mrf.mxu0
  %v693 = vadd.f32 %v622, %v692
  %694 = vmatmul.bf16.gmra.mxu0 %v598
  %v695 = vpop.f32.mrf.mxu0
  %v696 = vadd.f32 %v622, %v695
  %v697 = vpop.f32.mrf.mxu0
  %v698 = vadd.f32 %v622, %v697
  %699 = vmatmul.bf16.gmra.mxu0 %v599
  %v700 = vpop.f32.mrf.mxu0
  %v701 = vadd.f32 %v622, %v700
  %v702 = vpop.f32.mrf.mxu0
  %v703 = vadd.f32 %v622, %v702
  %704 = vmatmul.bf16.gmra.mxu0 %v600
  %v705 = vpop.f32.mrf.mxu0
  %v706 = vadd.f32 %v622, %v705
  %v707 = vpop.f32.mrf.mxu0
  %v708 = vadd.f32 %v622, %v707
  %709 = vmatmul.bf16.gmra.mxu0 %v601
  %v710 = vpop.f32.mrf.mxu0
  %v711 = vadd.f32 %v622, %v710
  %v712 = vpop.f32.mrf.mxu0
  %v713 = vadd.f32 %v622, %v712
  %714 = vmatmul.bf16.gmra.mxu0 %v602
  %v715 = vpop.f32.mrf.mxu0
  %v716 = vadd.f32 %v622, %v715
  %v717 = vpop.f32.mrf.mxu0
  %v718 = vadd.f32 %v622, %v717
  %719 = vmatmul.bf16.gmra.mxu0 %v603
  %v720 = vpop.f32.mrf.mxu0
  %v721 = vadd.f32 %v622, %v720
  %v722 = vpop.f32.mrf.mxu0
  %723 = vdwg.mxu0
  %v724 = vmax.f32 %v681, 0.0
  %v725 = vmax.f32 %v683, 0.0
  %v726 = vmax.f32 %v686, 0.0
  %v727 = vmax.f32 %v688, 0.0
  %v728 = vmax.f32 %v691, 0.0
  %v729 = vmax.f32 %v693, 0.0
  %v730 = vmax.f32 %v696, 0.0
  %v731 = vmax.f32 %v698, 0.0
  %v732 = vmax.f32 %v701, 0.0
  %v733 = vmax.f32 %v703, 0.0
  %v734 = vmax.f32 %v706, 0.0
  %v735 = vmax.f32 %v708, 0.0
  %v736 = vmax.f32 %v711, 0.0
  %v737 = vmax.f32 %v713, 0.0
  %v738 = vmax.f32 %v716, 0.0
  %v739 = vmax.f32 %v718, 0.0
  %v740 = vmax.f32 %v721, 0.0
  %v741 = vmax.f32 %v724, %v728
  %v742 = vmax.f32 %v725, %v729
  %v743 = vmax.f32 %v726, %v730
  %v744 = vmax.f32 %v727, %v731
  %v745 = vmax.f32 %v741, %v732
  %v746 = vmax.f32 %v742, %v733
  %v747 = vmax.f32 %v743, %v734
  %v748 = vmax.f32 %v744, %v735
  %v749 = vmax.f32 %v745, %v736
  %v750 = vmax.f32 %v746, %v737
  %v751 = vmax.f32 %v747, %v738
  %v752 = vmax.f32 %v748, %v739
  %vm753 = vcmask 1043456
  %v754 = vsel %vm753, %v740, -inf
  %v755 = vmax.f32 %v749, %v754
  %v756 = vmax.f32 %v755, %v750
  %v757 = vmax.f32 %v751, %v752
  %v758 = vmax.f32 %v756, %v757
  %v759 = vrot.slane %v758, 4
  %v760 = vmax.f32 %v758, %v759
  %v761 = vrot.slane %v760, 2
  %v762 = vmax.f32 %v760, %v761
  %v763 = vrot.slane %v762, 1
  %v764 = vmax.f32 %v762, %v763
  %v765 = vsub.f32 %v724, %v764
  %v766 = vsub.f32 %v725, %v764
  %v767 = vsub.f32 %v726, %v764
  %v768 = vsub.f32 %v727, %v764
  %v769 = vsub.f32 %v728, %v764
  %v770 = vsub.f32 %v729, %v764
  %v771 = vsub.f32 %v730, %v764
  %v772 = vsub.f32 %v731, %v764
  %v773 = vsub.f32 %v732, %v764
  %v774 = vsub.f32 %v733, %v764
  %v775 = vsub.f32 %v734, %v764
  %v776 = vsub.f32 %v735, %v764
  %v777 = vsub.f32 %v736, %v764
  %v778 = vsub.f32 %v737, %v764
  %v779 = vsub.f32 %v738, %v764
  %v780 = vsub.f32 %v739, %v764
  %v781 = vsub.f32 %v740, %v764
  %v782 = vmul.f32 %v765, 1.442695
  %v783 = vpow.pop %v782
  %v784 = vmul.f32 %v766, 1.442695
  %v785 = vpow.pop %v784
  %v786 = vmul.f32 %v767, 1.442695
  %v787 = vpow.pop %v786
  %v788 = vmul.f32 %v768, 1.442695
  %v789 = vpow.pop %v788
  %v790 = vmul.f32 %v769, 1.442695
  %v791 = vpow.pop %v790
  %v792 = vmul.f32 %v770, 1.442695
  %v793 = vpow.pop %v792
  %v794 = vmul.f32 %v771, 1.442695
  %v795 = vpow.pop %v794
  %v796 = vmul.f32 %v772, 1.442695
  %v797 = vpow.pop %v796
  %v798 = vmul.f32 %v773, 1.442695
  %v799 = vpow.pop %v798
  %v800 = vmul.f32 %v774, 1.442695
  %v801 = vpow.pop %v800
  %v802 = vmul.f32 %v775, 1.442695
  %v803 = vpow.pop %v802
  %v804 = vmul.f32 %v776, 1.442695
  %v805 = vpow.pop %v804
  %v806 = vmul.f32 %v777, 1.442695
  %v807 = vpow.pop %v806
  %v808 = vmul.f32 %v778, 1.442695
  %v809 = vpow.pop %v808
  %v810 = vmul.f32 %v779, 1.442695
  %v811 = vpow.pop %v810
  %v812 = vmul.f32 %v780, 1.442695
  %v813 = vpow.pop %v812
  %v814 = vmul.f32 %v781, 1.442695
  %v815 = vpow.pop %v814
  %v816 = vadd.f32 %v783, %v785
  %v817 = vadd.f32 %v816, %v787
  %v818 = vadd.f32 %v817, %v789
  %v819 = vadd.f32 %v818, %v791
  %v820 = vadd.f32 %v819, %v793
  %v821 = vadd.f32 %v820, %v795
  %v822 = vadd.f32 %v821, %v797
  %v823 = vadd.f32 %v822, %v799
  %v824 = vadd.f32 %v823, %v801
  %v825 = vadd.f32 %v824, %v803
  %v826 = vadd.f32 %v825, %v805
  %v827 = vadd.f32 %v826, %v807
  %v828 = vadd.f32 %v827, %v809
  %v829 = vadd.f32 %v828, %v811
  %v830 = vadd.f32 %v829, %v813
  %v831 = vsel %vm753, %v815, 0.0
  %v832 = vadd.f32 %v830, %v831
  %v833 = vrot.slane %v832, 4
  %v834 = vadd.f32 %v832, %v833
  %v835 = vrot.slane %v834, 2
  %v836 = vadd.f32 %v834, %v835
  %v837 = vrot.slane %v836, 1
  %v838 = vadd.f32 %v836, %v837
  %v839 = vlog2.pop %v838
  %v840 = vmul.f32 %v839, 0.6931472
  %v841 = vsub.f32 %v765, %v840
  %v842 = vsub.f32 %v766, %v840
  %v843 = vsub.f32 %v767, %v840
  %v844 = vsub.f32 %v768, %v840
  %v845 = vsub.f32 %v769, %v840
  %v846 = vsub.f32 %v770, %v840
  %v847 = vsub.f32 %v771, %v840
  %v848 = vsub.f32 %v772, %v840
  %v849 = vsub.f32 %v773, %v840
  %v850 = vsub.f32 %v774, %v840
  %v851 = vsub.f32 %v775, %v840
  %v852 = vsub.f32 %v776, %v840
  %v853 = vsub.f32 %v777, %v840
  %v854 = vsub.f32 %v778, %v840
  %v855 = vsub.f32 %v779, %v840
  %v856 = vsub.f32 %v780, %v840
  %v857 = vsub.f32 %v781, %v840
  %858 = vst [vmem:[%s3] sm:$0xff] %v841
  %859 = vst [vmem:[%s3 + $0x8] sm:$0xff] %v842
  %860 = vst [vmem:[%s3 + $0x10] sm:$0xff] %v843
  %861 = vst [vmem:[%s3 + $0x18] sm:$0xff] %v844
  %862 = vst [vmem:[%s3 + $0x20] sm:$0xff] %v845
  %863 = vst [vmem:[%s3 + $0x28] sm:$0xff] %v846
  %864 = vst [vmem:[%s3 + $0x30] sm:$0xff] %v847
  %865 = vst [vmem:[%s3 + $0x38] sm:$0xff] %v848
  %866 = vst [vmem:[%s3 + $0x40] sm:$0xff] %v849
  %867 = vst [vmem:[%s3 + $0x48] sm:$0xff] %v850
  %868 = vst [vmem:[%s3 + $0x50] sm:$0xff] %v851
  %869 = vst [vmem:[%s3 + $0x58] sm:$0xff] %v852
  %870 = vst [vmem:[%s3 + $0x60] sm:$0xff] %v853
  %871 = vst [vmem:[%s3 + $0x68] sm:$0xff] %v854
  %872 = vst [vmem:[%s3 + $0x70] sm:$0xff] %v855
  %873 = vst [vmem:[%s3 + $0x78] sm:$0xff] %v856
  %874 = vst [vmem:[%s3 + $0x80] sm:$0xf] %v857
  // Predicated region
  $region14: #{cbow_forward.1} parent=0 // pred_check
    _
  $region15: #{cbow_forward.1} parent=0 // pred_check_branch
    %876 = sbr.rel (0) target = $region17
  $region16: #{cbow_forward.1} parent=0 // pred_region
    _
  $region17: #{cbow_forward.1} parent=0 // pred_fallthru
    _
  // Predicated region
  $region18: #{cbow_forward.1} parent=0 // pred_check
    _
  $region19: #{cbow_forward.1} parent=0 // pred_check_branch
    %878 = sbr.rel (0) target = $region21
  $region20: #{cbow_forward.1} parent=0 // pred_region
    _
  $region21: #{cbow_forward.1} parent=0 // pred_fallthru
    _

</llo_original>
